<compile_context>
chip_gen: v7x
topology: tpu7x:2x2x1
jax: 0.10.0
libtpu: 0.0.40
codegen_flags: <defaults>
</compile_context>

<pallas_src>
import functools
import math

import jax
import jax.numpy as jnp
from jax.experimental import pallas as pl
from jax.experimental.pallas import tpu as pltpu

LANES = 128
SUBLANES = 8
CHUNK_ROWS = 128            # inner reduction chunk: (128,128) f32 = 16 vregs
DEFAULT_BLOCK_ROWS = 4096   # (4096,128) f32 = 2 MiB/input; x3 inputs x2 buf = 12 MiB


def _num_tensorcores():
    """Best-effort TensorCores sharing this kernel (megacore / v7x -> 2)."""
    try:
        kind = str(jax.devices()[0].device_kind).lower()
    except Exception:
        return 1
    # v5e / v6e ("lite" parts) expose a single TensorCore per device.
    if "lite" in kind or "v5e" in kind or "v6e" in kind:
        return 1
    return 2


def _heatmap_loss_kernel(pred_ref, gt_ref, mask_ref, out_ref, *,
                         block_rows, chunk_rows, total_rows, steps, needs_mask):
    p = pl.program_id(0)   # TensorCore split ("parallel")
    i = pl.program_id(1)   # streaming/reduction step within the split

    @pl.when(i == 0)
    def _():
        out_ref[...] = jnp.zeros_like(out_ref)

    row0 = (p * steps + i) * block_rows
    n_chunks = block_rows // chunk_rows

    def chunk_partial(c):
        start = c * chunk_rows
        ds = pl.ds(pl.multiple_of(start, chunk_rows), chunk_rows)
        d = (pred_ref[ds, :].astype(jnp.float32)
             - gt_ref[ds, :].astype(jnp.float32))
        sq = d * d * mask_ref[ds, :].astype(jnp.float32)
        if needs_mask:
            # Zero rows past the real extent (ragged last tile, or the clamped
            # duplicate tile of an over-provisioned split). Select-based, so
            # NaN/Inf garbage in OOB regions cannot leak through.
            ridx = (row0 + start
                    + jax.lax.broadcasted_iota(jnp.int32, (chunk_rows, LANES), 0))
            sq = jnp.where(ridx < total_rows, sq, 0.0)
        # Fold the chunk onto one (8, 128) slab with pure VPU adds.
        return sq.reshape(chunk_rows // SUBLANES, SUBLANES, LANES).sum(axis=0)

    acc = jax.lax.fori_loop(
        0, n_chunks, lambda c, a: a + chunk_partial(c),
        jnp.zeros((SUBLANES, LANES), jnp.float32), unroll=True)

    # out_ref's block index depends only on `p`, so it stays resident in VMEM
    # across the whole `i` axis (accumulator pattern): one RMW per tile.
    out_ref[...] += acc[None]


def heatmap_loss(pred, gt, mask, *, block_rows=DEFAULT_BLOCK_ROWS, num_splits=None):
    """Pallas implementation of HeatmapLoss.forward (scalar global mean)."""
    assert pred.shape == gt.shape == mask.shape
    flat_len = math.prod(pred.shape)

    rows = max(pl.cdiv(flat_len, LANES), SUBLANES)
    padded_len = rows * LANES

    def _prep(x):
        x = jnp.ravel(x)  # native dtype; cast to f32 happens in-kernel
        if padded_len != flat_len:
            # Rare ragged-lane fallback (flat size not a multiple of 128);
            # zero pads contribute zero to the sum.
            x = jnp.pad(x, (0, padded_len - flat_len))
        return x.reshape(rows, LANES)  # free reshape in the common case

    pred2, gt2, mask2 = _prep(pred), _prep(gt), _prep(mask)

    # Tile-size selection: largest multiple of the inner chunk that fits.
    br = min(block_rows, rows)
    if br >= CHUNK_ROWS:
        br = (br // CHUNK_ROWS) * CHUNK_ROWS
        chunk = CHUNK_ROWS
    else:
        br = max((br // SUBLANES) * SUBLANES, SUBLANES)
        chunk = br

    nblocks = pl.cdiv(rows, br)
    splits = num_splits if num_splits is not None else _num_tensorcores()
    splits = max(1, min(splits, nblocks))
    steps = pl.cdiv(nblocks, splits)
    # The grid may over-cover the data (ragged last tile and/or clamped
    # duplicate tiles). Only then does the kernel need the row-validity mask.
    needs_mask = (splits * steps * br) != rows

    def in_map(p, i):
        # Clamp so over-provisioned trailing steps re-read a valid block; the
        # in-kernel row mask zeroes their contribution.
        return (jnp.minimum(p * steps + i, nblocks - 1), 0)

    kernel = functools.partial(
        _heatmap_loss_kernel, block_rows=br, chunk_rows=chunk,
        total_rows=rows, steps=steps, needs_mask=needs_mask)

    itemsize_sum = (pred2.dtype.itemsize + gt2.dtype.itemsize
                    + mask2.dtype.itemsize)
    out_bytes = splits * SUBLANES * LANES * 4
    vmem_need = 2 * br * LANES * itemsize_sum + out_bytes
    vmem_limit = int(min(max(vmem_need + (16 << 20), 32 << 20), 64 << 20))

    partials = pl.pallas_call(
        kernel,
        out_shape=jax.ShapeDtypeStruct((splits, SUBLANES, LANES), jnp.float32),
        grid_spec=pltpu.PrefetchScalarGridSpec(
            num_scalar_prefetch=0,
            grid=(splits, steps),
            in_specs=[
                pl.BlockSpec((br, LANES), in_map),
                pl.BlockSpec((br, LANES), in_map),
                pl.BlockSpec((br, LANES), in_map),
            ],
            out_specs=pl.BlockSpec((1, SUBLANES, LANES), lambda p, i: (p, 0, 0)),
        ),
        compiler_params=pltpu.CompilerParams(
            dimension_semantics=("parallel", "arbitrary"),
            vmem_limit_bytes=vmem_limit,
        ),
        cost_estimate=pl.CostEstimate(
            flops=4 * flat_len,
            transcendentals=0,
            bytes_accessed=flat_len * itemsize_sum + out_bytes,
        ),
    )(pred2, gt2, mask2)

    # Single tiny cross-lane reduce + scale, outside the hot loop.
    return jnp.sum(partials) / flat_len


def heatmap_loss_ref(pred, gt, mask):
    """Pure-JAX reference matching the PyTorch module exactly (scalar output)."""
    loss = (pred - gt) ** 2 * mask
    return loss.mean(axis=3).mean(axis=2).mean(axis=1).mean(axis=0)


if __name__ == "__main__":
    key = jax.random.PRNGKey(0)
    k1, k2, k3 = jax.random.split(key, 3)

    N, C, H, W = 2, 4, 16, 16  # small NCHW shapes consistent with the module
    pred = jax.random.normal(k1, (N, C, H, W), dtype=jnp.float32)
    gt = jax.random.normal(k2, (N, C, H, W), dtype=jnp.float32)
    mask = (jax.random.uniform(k3, (N, C, H, W)) > 0.3).astype(jnp.float32)

    out = heatmap_loss(pred, gt, mask)
    out = jax.block_until_ready(out)

    ref = heatmap_loss_ref(pred, gt, mask)
    assert jnp.allclose(out, ref, rtol=1e-5, atol=1e-6), (out, ref)

    print("KERNEL_OK")
</pallas_src>

<mosaic_0001>
module attributes {stable_mosaic.version = 11 : i64} {
  func.func @_heatmap_loss_kernel(%arg0: i32, %arg1: i32, %arg2: memref<16x128xf32, #tpu.memory_space<vmem>>, %arg3: memref<16x128xf32, #tpu.memory_space<vmem>>, %arg4: memref<16x128xf32, #tpu.memory_space<vmem>>, %arg5: memref<1x8x128xf32, #tpu.memory_space<vmem>>) attributes {dimension_semantics = [#tpu.dimension_semantics<parallel>, #tpu.dimension_semantics<arbitrary>], iteration_bounds = array<i64: 1, 1>, scalar_prefetch = 0 : i64, scratch_operands = 0 : i64, tpu.core_type = #tpu.core_type<tc>, window_params = [{transform_indices = @transform_0, window_bounds = array<i64: 16, 128>}, {transform_indices = @transform_1, window_bounds = array<i64: 16, 128>}, {transform_indices = @transform_2, window_bounds = array<i64: 16, 128>}, {transform_indices = @transform_3, window_bounds = array<i64: 1, 8, 128>}]} {
    %c0_i32 = arith.constant 0 : i32
    %0 = arith.cmpi eq, %arg1, %c0_i32 : i32
    %1 = arith.extui %0 : i1 to i32
    %c0_i32_0 = arith.constant 0 : i32
    %2 = arith.cmpi ne, %1, %c0_i32_0 : i32
    scf.if %2 {
      %cst_11 = arith.constant 0.000000e+00 : f32
      %22 = vector.broadcast %cst_11 : f32 to vector<1x8x128xf32>
      %c0_12 = arith.constant 0 : index
      %c0_13 = arith.constant 0 : index
      %c0_14 = arith.constant 0 : index
      %23 = vector.load %arg5[%c0_12, %c0_13, %c0_14] : memref<1x8x128xf32, #tpu.memory_space<vmem>>, vector<1x8x128xf32>
      tpu.vector_store %arg5[%c0_12, %c0_13, %c0_14], %22 {strides = array<i32>} : memref<1x8x128xf32, #tpu.memory_space<vmem>>, vector<1x8x128xf32>,
    } else {
    }
    %cst = arith.constant 0.000000e+00 : f32
    %3 = vector.broadcast %cst : f32 to vector<8x128xf32>
    %c0_i32_1 = arith.constant 0 : i32
    %c16_i32 = arith.constant 16 : i32
    %4 = arith.muli %c0_i32_1, %c16_i32 : i32
    %5 = tpu.assume_multiple %4, 16 : i32
    %6 = arith.index_cast %5 : i32 to index
    %c0 = arith.constant 0 : index
    %7 = vector.load %arg2[%6, %c0] : memref<16x128xf32, #tpu.memory_space<vmem>>, vector<16x128xf32>
    %8 = arith.index_cast %5 : i32 to index
    %c0_2 = arith.constant 0 : index
    %9 = vector.load %arg3[%8, %c0_2] : memref<16x128xf32, #tpu.memory_space<vmem>>, vector<16x128xf32>
    %10 = arith.subf %7, %9 : vector<16x128xf32>
    %11 = arith.mulf %10, %10 : vector<16x128xf32>
    %12 = arith.index_cast %5 : i32 to index
    %c0_3 = arith.constant 0 : index
    %13 = vector.load %arg4[%12, %c0_3] : memref<16x128xf32, #tpu.memory_space<vmem>>, vector<16x128xf32>
    %14 = arith.mulf %11, %13 : vector<16x128xf32>
    %15 = vector.shape_cast %14 : vector<16x128xf32> to vector<2x8x128xf32>
    %cst_4 = arith.constant dense<0.000000e+00> : vector<8x128xf32>
    %16 = vector.multi_reduction <add>, %15, %cst_4 [0] : vector<2x8x128xf32> to vector<8x128xf32>
    %17 = arith.addf %3, %16 : vector<8x128xf32>
    %c1_i32 = arith.constant 1 : i32
    %c0_5 = arith.constant 0 : index
    %c0_6 = arith.constant 0 : index
    %c0_7 = arith.constant 0 : index
    %18 = vector.load %arg5[%c0_5, %c0_6, %c0_7] : memref<1x8x128xf32, #tpu.memory_space<vmem>>, vector<1x8x128xf32>
    %19 = vector.shape_cast %17 : vector<8x128xf32> to vector<1x8x128xf32>
    %20 = arith.addf %18, %19 : vector<1x8x128xf32>
    %c0_8 = arith.constant 0 : index
    %c0_9 = arith.constant 0 : index
    %c0_10 = arith.constant 0 : index
    %21 = vector.load %arg5[%c0_8, %c0_9, %c0_10] : memref<1x8x128xf32, #tpu.memory_space<vmem>>, vector<1x8x128xf32>
    tpu.vector_store %arg5[%c0_8, %c0_9, %c0_10], %20 {strides = array<i32>} : memref<1x8x128xf32, #tpu.memory_space<vmem>>, vector<1x8x128xf32>,
    return
  }
  func.func @transform_0(%arg0: i32, %arg1: i32) -> (i32, i32) {
    %c1_i32 = arith.constant 1 : i32
    %0 = arith.muli %arg0, %c1_i32 : i32
    %1 = arith.addi %0, %arg1 : i32
    %c0_i32 = arith.constant 0 : i32
    %2 = arith.minsi %1, %c0_i32 : i32
    %c0_i32_0 = arith.constant 0 : i32
    %c0_i32_1 = arith.constant 0 : i32
    return %2, %c0_i32_0 : i32, i32
  }
  func.func @transform_1(%arg0: i32, %arg1: i32) -> (i32, i32) {
    %c1_i32 = arith.constant 1 : i32
    %0 = arith.muli %arg0, %c1_i32 : i32
    %1 = arith.addi %0, %arg1 : i32
    %c0_i32 = arith.constant 0 : i32
    %2 = arith.minsi %1, %c0_i32 : i32
    %c0_i32_0 = arith.constant 0 : i32
    %c0_i32_1 = arith.constant 0 : i32
    return %2, %c0_i32_0 : i32, i32
  }
  func.func @transform_2(%arg0: i32, %arg1: i32) -> (i32, i32) {
    %c1_i32 = arith.constant 1 : i32
    %0 = arith.muli %arg0, %c1_i32 : i32
    %1 = arith.addi %0, %arg1 : i32
    %c0_i32 = arith.constant 0 : i32
    %2 = arith.minsi %1, %c0_i32 : i32
    %c0_i32_0 = arith.constant 0 : i32
    %c0_i32_1 = arith.constant 0 : i32
    return %2, %c0_i32_0 : i32, i32
  }
  func.func @transform_3(%arg0: i32, %arg1: i32) -> (i32, i32, i32) {
    %c0_i32 = arith.constant 0 : i32
    %c0_i32_0 = arith.constant 0 : i32
    %c0_i32_1 = arith.constant 0 : i32
    return %arg0, %c0_i32, %c0_i32_0 : i32, i32, i32
  }
}

</mosaic_0001>

<llo_original>
// kernel: tpu_custom_call.1
$region0: #{tpu_custom_call.1}
  #allocation0 [shape = 'u32[]', space=smem, size = 0x4, offset = 0x4, fixed_abs, tag = 'smem constant byte address 0x4 - core index']
  #allocation1 [shape = 'u32[144,128]{1,0:T(1,128)}', space=vmem, size = 0x12000, scoped, tag = 'internal scratch']
  %s0 = inlined_call_operand.hbm [shape: f32[16,128], index: 0, kind: input, shape index: {}]
  %s1 = inlined_call_operand.hbm [shape: f32[16,128], index: 1, kind: input, shape index: {}]
  %s2 = inlined_call_operand.hbm [shape: f32[16,128], index: 2, kind: input, shape index: {}]
  %s3 = inlined_call_operand.hbm [shape: f32[1,8,128], index: 3, kind: output, shape index: {}]
  %s4 = sld [smem:[#allocation0]]
  $region38: #{tpu_custom_call.1} parent=0
    _
  %s6 = ssub.s32 1, %s4
  %s7 = scalar_select 0, %s6, %s4
  $region1: #{tpu_custom_call.1} parent=0
    #allocation2 [shape = 'u8[8192]{0}', space=vmem, size = 0x2000, scoped, tag = 'input window, operand 0, single buffered']
    #allocation3 [shape = 's32[1]{0}', space=sflag, size = 0x4, scoped, tag = 'scoped memory for tpu_custom_call.1']
    #allocation4 [shape = 's32[1]{0}', space=sflag, size = 0x4, scoped, tag = 'scoped memory for tpu_custom_call.1']
    #allocation5 [shape = 'u8[8192]{0}', space=vmem, size = 0x2000, scoped, tag = 'input window, operand 1, single buffered']
    #allocation6 [shape = 's32[1]{0}', space=sflag, size = 0x4, scoped, tag = 'scoped memory for tpu_custom_call.1']
    #allocation7 [shape = 'u8[8192]{0}', space=vmem, size = 0x2000, scoped, tag = 'input window, operand 2, single buffered']
    #allocation8 [shape = 'u8[4096]{0}', space=vmem, size = 0x1000, scoped, tag = 'output window, operand 0, single buffered']
    %8 = vsyncpa [#allocation3], 0
    %9 = vsyncpa [#allocation6], 0
    %10 = vsyncpa [#allocation4], 0
    // Predicated region
    $region2: #{tpu_custom_call.1} parent=1 // pred_check
      _
    $region3: #{tpu_custom_call.1} parent=1 // pred_check_branch
      %12 = sbr.rel (0) target = $region5
    $region4: #{tpu_custom_call.1} parent=1 // pred_region
      %s13 = sadd.s32 0, 0
      %p14 = scmp.lt.s32.totalorder %s13, 0
      %s15 = scalar_select %p14, %s13, 0
      %s16 = smul.u32 2, %s15
      %s18 = ssub.s32 256, 256
      %19 = vsyncadd [#allocation3], %s18
      %s20 = smul.addr %s16, 128
      %s21 = scalar_lea.hbm %s0, %s20
      %s22 = sshll.u32 [#allocation2], 4
      %s23 = int_to_ptr.vmem [resolvable:$true] %s22
      %28 = dma.hbm_to_vmem [thread:$0]  %s21, 256, %s23, [#allocation3], 128, 128, 8
    $region5: #{tpu_custom_call.1} parent=1 // pred_fallthru
      _
    // Predicated region
    $region6: #{tpu_custom_call.1} parent=1 // pred_check
      _
    $region7: #{tpu_custom_call.1} parent=1 // pred_check_branch
      %30 = sbr.rel (0) target = $region9
    $region8: #{tpu_custom_call.1} parent=1 // pred_region
      %s31 = sadd.s32 0, 0
      %p32 = scmp.lt.s32.totalorder %s31, 0
      %s33 = scalar_select %p32, %s31, 0
      %s34 = smul.u32 2, %s33
      %s36 = ssub.s32 256, 256
      %37 = vsyncadd [#allocation6], %s36
      %s38 = smul.addr %s34, 128
      %s39 = scalar_lea.hbm %s1, %s38
      %s40 = sshll.u32 [#allocation5], 4
      %s41 = int_to_ptr.vmem [resolvable:$true] %s40
      %46 = dma.hbm_to_vmem [thread:$0]  %s39, 256, %s41, [#allocation6], 128, 128, 8
    $region9: #{tpu_custom_call.1} parent=1 // pred_fallthru
      _
    // Predicated region
    $region10: #{tpu_custom_call.1} parent=1 // pred_check
      _
    $region11: #{tpu_custom_call.1} parent=1 // pred_check_branch
      %48 = sbr.rel (0) target = $region13
    $region12: #{tpu_custom_call.1} parent=1 // pred_region
      %s49 = sadd.s32 0, 0
      %p50 = scmp.lt.s32.totalorder %s49, 0
      %s51 = scalar_select %p50, %s49, 0
      %s52 = smul.u32 2, %s51
      %s54 = ssub.s32 256, 256
      %55 = vsyncadd [#allocation6], %s54
      %s56 = smul.addr %s52, 128
      %s57 = scalar_lea.hbm %s2, %s56
      %s58 = sshll.u32 [#allocation7], 4
      %s59 = int_to_ptr.vmem [resolvable:$true] %s58
      %64 = dma.hbm_to_vmem [thread:$0]  %s57, 256, %s59, [#allocation6], 128, 128, 8
    $region13: #{tpu_custom_call.1} parent=1 // pred_fallthru
      _
    // Predicated region
    $region14: #{tpu_custom_call.1} parent=1 // pred_check
      _
    $region15: #{tpu_custom_call.1} parent=1 // pred_check_branch
      %66 = sbr.rel (0) target = $region17
    $region16: #{tpu_custom_call.1} parent=1 // pred_region
      %67 = dma.done [#allocation3], 256
    $region17: #{tpu_custom_call.1} parent=1 // pred_fallthru
      _
    // Predicated region
    $region18: #{tpu_custom_call.1} parent=1 // pred_check
      _
    $region19: #{tpu_custom_call.1} parent=1 // pred_check_branch
      %69 = sbr.rel (0) target = $region21
    $region20: #{tpu_custom_call.1} parent=1 // pred_region
      %70 = dma.done [#allocation6], 256
    $region21: #{tpu_custom_call.1} parent=1 // pred_fallthru
      _
    // Predicated region
    $region22: #{tpu_custom_call.1} parent=1 // pred_check
      _
    $region23: #{tpu_custom_call.1} parent=1 // pred_check_branch
      %72 = sbr.rel (0) target = $region25
    $region24: #{tpu_custom_call.1} parent=1 // pred_region
      %73 = dma.done [#allocation6], 256
    $region25: #{tpu_custom_call.1} parent=1 // pred_fallthru
      _
    %s74 = sadd.s32 0, 0
    %p75 = scmp.lt.s32.totalorder %s74, 0
    %s76 = scalar_select %p75, %s74, 0
    %s77 = smul.u32 2, %s76
    %s78 = sadd.s32 0, 0
    %p79 = scmp.lt.s32.totalorder %s78, 0
    %s80 = scalar_select %p79, %s78, 0
    %s81 = smul.u32 2, %s80
    %s82 = sadd.s32 0, 0
    %p83 = scmp.lt.s32.totalorder %s82, 0
    %s84 = scalar_select %p83, %s82, 0
    %s85 = smul.u32 2, %s84
    %p86 = scmp.eq.s32.totalorder 0, 0
    // Predicated region
    $region26: #{tpu_custom_call.1} parent=1 // pred_check
      %p87 = pneg %p86
    $region27: #{tpu_custom_call.1} parent=1 // pred_check_branch
      %89 = sbr.rel (%p87) target = $region29
    $region28: #{tpu_custom_call.1} parent=1 // pred_region
      %90 = vst [vmem:[#allocation8] sm:$0xff] 0.0
    $region29: #{tpu_custom_call.1} parent=1 // pred_fallthru
      _
    %v91 = vld [vmem:[#allocation2] sm:$0xff]
    %v92 = vld [vmem:[#allocation2 + $0x8] sm:$0xff]
    %v93 = vld [vmem:[#allocation5] sm:$0xff]
    %v94 = vld [vmem:[#allocation5 + $0x8] sm:$0xff]
    %v95 = vsub.f32 %v91, %v93
    %v96 = vsub.f32 %v92, %v94
    %v97 = vmul.f32 %v95, %v95
    %v98 = vmul.f32 %v96, %v96
    %v99 = vld [vmem:[#allocation7] sm:$0xff]
    %v100 = vld [vmem:[#allocation7 + $0x8] sm:$0xff]
    %v101 = vmul.f32 %v97, %v99
    %v102 = vmul.f32 %v98, %v100
    %v103 = vadd.f32 %v101, %v102
    %v104 = vadd.f32 %v103, 0.0
    %v105 = vld [vmem:[#allocation8] sm:$0xff]
    %v106 = vadd.f32 %v105, %v104
    %107 = vst [vmem:[#allocation8] sm:$0xff] %v106
    // Predicated region
    $region30: #{tpu_custom_call.1} parent=1 // pred_check
      _
    $region31: #{tpu_custom_call.1} parent=1 // pred_check_branch
      %109 = sbr.rel (0) target = $region33
    $region32: #{tpu_custom_call.1} parent=1 // pred_region
      %s111 = ssub.s32 128, 128
      %112 = vsyncadd [#allocation4], %s111
      %s114 = sshll.u32 [#allocation8], 4
      %s115 = int_to_ptr.vmem [resolvable:$true] %s114
      %117 = dma.vmem_to_hbm [thread:$0]  %s115, 128, %s3, [#allocation4]
    $region33: #{tpu_custom_call.1} parent=1 // pred_fallthru
      _
    // Predicated region
    $region34: #{tpu_custom_call.1} parent=1 // pred_check
      _
    $region35: #{tpu_custom_call.1} parent=1 // pred_check_branch
      %119 = sbr.rel (0) target = $region37
    $region36: #{tpu_custom_call.1} parent=1 // pred_region
      %120 = dma.done [#allocation4], 128
    $region37: #{tpu_custom_call.1} parent=1 // pred_fallthru
      _
    %121 = vsyncpa [#allocation3], 1
    %122 = vsyncpa [#allocation6], 1
    %123 = vsyncpa [#allocation4], 1

</llo_original>
